<compile_context>
chip_gen: v6e
topology: v6e:2x2x1
jax: 0.10.0
libtpu: 0.0.40
codegen_flags: <defaults>
</compile_context>

<pallas_src>
import functools

import jax
import jax.numpy as jnp
from jax.experimental import pallas as pl
from jax.experimental.pallas import tpu as pltpu


def _mm(a, b):
    # Host-side f32 matmul at full precision (used only for folding / reference).
    return jnp.matmul(a, b, precision=jax.lax.Precision.HIGHEST)


def mlp_kernel(x_ref, wf_ref, bf_ref, w5_ref, b5_ref, o_ref):
    """One batch tile:  relu(x @ W_fold + b_fold) @ W5 + b5.

    x_ref : (TM, nx)     f32   batch tile (pipelined over the grid)
    wf_ref: (nx, Hp)     bf16  folded W1@W2@W3@W4, columns padded to 128
    bf_ref: (1, Hp)      f32
    w5_ref: (Hp, Np)     bf16  final projection, rows/cols padded to 128
    b5_ref: (1, Np)      f32
    o_ref : (TM, Np)     bf16  lane-dense, half-width writeback
    """
    x_bf = x_ref[...].astype(jnp.bfloat16)
    h = jnp.dot(x_bf, wf_ref[...], preferred_element_type=jnp.float32)
    h = jnp.maximum(h + bf_ref[...], 0.0)                      # bias + ReLU in f32
    o = jnp.dot(h.astype(jnp.bfloat16), w5_ref[...],
                preferred_element_type=jnp.float32) + b5_ref[...]
    o_ref[...] = o.astype(o_ref.dtype)


def fold_params(params):
    """Fold the four back-to-back Linear layers into one affine (pure f32 algebra)."""
    (w1, b1), (w2, b2), (w3, b3), (w4, b4), (w5, b5) = params
    w_fold = _mm(_mm(_mm(w1, w2), w3), w4)                      # (nx, 100)
    b_fold = _mm(_mm(_mm(b1, w2) + b2, w3) + b3, w4) + b4       # (1, 100)
    return w_fold, b_fold, w5, b5


def pack_for_kernel(w_fold, b_fold, w5, b5, lane_pad=128):
    """bf16 weights + f32 biases; pad hidden dim and output dim to 128 lanes."""
    nx, h = w_fold.shape
    ny = w5.shape[1]
    h_pad = pl.cdiv(h, lane_pad) * lane_pad                     # 100 -> 128
    n_pad = pl.cdiv(ny, lane_pad) * lane_pad                    # 2   -> 128
    wf = jnp.zeros((nx, h_pad), jnp.float32).at[:, :h].set(w_fold)
    bf = jnp.zeros((1, h_pad), jnp.float32).at[:, :h].set(b_fold)
    w5p = jnp.zeros((h_pad, n_pad), jnp.float32).at[:h, :ny].set(w5)
    b5p = jnp.zeros((1, n_pad), jnp.float32).at[:, :ny].set(b5)
    return (wf.astype(jnp.bfloat16), bf.astype(jnp.float32),
            w5p.astype(jnp.bfloat16), b5p.astype(jnp.float32))


def _choose_tm(B, tm_cap=1024):
    """Batch tile: multiple of 8, as large as practical, >=2 tiles when B allows
    so dimension_semantics=('parallel',) can shard across both v7x TensorCores."""
    b8 = pl.cdiv(B, 8) * 8
    if b8 <= 8:
        return 8
    tm = min(tm_cap, max(8, pl.cdiv(b8, 2)))   # aim for at least two grid steps
    return pl.cdiv(tm, 8) * 8


def mlp_forward(x, w_fold, b_fold, w5p, b5p, *, ny, tm=None):
    """x: (B, nx) f32.  Packed params from pack_for_kernel.  Returns (B, ny) f32."""
    B, nx = x.shape
    H = w_fold.shape[1]            # padded hidden (128)
    n_pad = w5p.shape[1]           # padded output (128)

    if tm is None:
        tm = _choose_tm(B)
    tm = pl.cdiv(min(tm, pl.cdiv(B, 8) * 8), 8) * 8
    bp = pl.cdiv(B, tm) * tm
    if bp != B:
        x = jnp.zeros((bp, nx), x.dtype).at[:B].set(x)

    out = pl.pallas_call(
        mlp_kernel,
        out_shape=jax.ShapeDtypeStruct((bp, n_pad), jnp.bfloat16),
        grid=(bp // tm,),
        in_specs=[
            pl.BlockSpec((tm, nx), lambda i: (i, 0)),      # x: tiled over batch
            pl.BlockSpec((nx, H), lambda i: (0, 0)),       # folded weight, resident
            pl.BlockSpec((1, H), lambda i: (0, 0)),        # folded bias, resident
            pl.BlockSpec((H, n_pad), lambda i: (0, 0)),    # output projection, resident
            pl.BlockSpec((1, n_pad), lambda i: (0, 0)),    # output bias, resident
        ],
        out_specs=pl.BlockSpec((tm, n_pad), lambda i: (i, 0)),
        compiler_params=pltpu.CompilerParams(
            dimension_semantics=("parallel",)),            # shard batch tiles across TCs
    )(x, w_fold, b_fold, w5p, b5p)
    # Padded batch rows / padded lanes carry garbage; sliced off here. Cast to f32.
    return out[:B, :ny].astype(jnp.float32)


def init_linear(key, fan_in, fan_out):
    """PyTorch-style init U(-1/sqrt(fan_in), 1/sqrt(fan_in)); W is (in, out)."""
    kw, kb = jax.random.split(key)
    bound = 1.0 / (fan_in ** 0.5)
    w = jax.random.uniform(kw, (fan_in, fan_out), jnp.float32, -bound, bound)
    b = jax.random.uniform(kb, (1, fan_out), jnp.float32, -bound, bound)
    return w, b


def make_params(key, nx=10, ny=2):
    dims = [(nx, 100), (100, 1000), (1000, 300), (300, 100), (100, ny)]
    keys = jax.random.split(key, len(dims))
    return [init_linear(k, fi, fo) for k, (fi, fo) in zip(keys, dims)]


def reference_forward(x, params):
    h = x.reshape(x.shape[0], -1)
    for i, (w, b) in enumerate(params):
        h = _mm(h, w) + b
        if i == 3:                      # ReLU after the 4th Linear
            h = jnp.maximum(h, 0.0)
    return h


if __name__ == "__main__":
    key = jax.random.PRNGKey(0)
    k_params, k_x = jax.random.split(key)

    nx, ny, batch = 10, 2, 8
    params = make_params(k_params, nx=nx, ny=ny)
    # x.view(x.size(0), -1) is the identity for a (B, nx) input.
    x = jax.random.normal(k_x, (batch, nx), jnp.float32)

    # One-time offline fold + pack (the dominant win: ~1.7 MiB -> ~34 KiB weights).
    w_fold, b_fold, w5, b5 = fold_params(params)
    packed = pack_for_kernel(w_fold, b_fold, w5, b5)

    fwd = jax.jit(functools.partial(mlp_forward, ny=ny))
    out = jax.block_until_ready(fwd(x, *packed))

    # Reference 1: original 5-layer chain in f32.
    ref = reference_forward(x, params)
    # Reference 2: folded f32 math — validates the algebraic fold tightly.
    folded_ref = _mm(jnp.maximum(_mm(x, w_fold) + b_fold, 0.0), w5) + b5

    assert out.shape == (batch, ny), out.shape
    assert jnp.allclose(folded_ref, ref, atol=1e-4, rtol=1e-4), "fold mismatch"
    # Kernel uses bf16 MXU inputs and a bf16 output store -> looser tolerance.
    assert jnp.allclose(out, ref, atol=2e-2, rtol=2e-2), "kernel mismatch vs reference"

    print("KERNEL_OK")
</pallas_src>

<mosaic_0001>
module attributes {stable_mosaic.version = 11 : i64} {
  func.func @mlp_kernel(%arg0: i32, %arg1: memref<8x10xf32, #tpu.memory_space<vmem>>, %arg2: memref<10x128xbf16, #tpu.memory_space<vmem>>, %arg3: memref<1x128xf32, #tpu.memory_space<vmem>>, %arg4: memref<128x128xbf16, #tpu.memory_space<vmem>>, %arg5: memref<1x128xf32, #tpu.memory_space<vmem>>, %arg6: memref<8x128xbf16, #tpu.memory_space<vmem>>) attributes {dimension_semantics = [#tpu.dimension_semantics<parallel>], iteration_bounds = array<i64: 1>, scalar_prefetch = 0 : i64, scratch_operands = 0 : i64, tpu.core_type = #tpu.core_type<tc>, window_params = [{transform_indices = @transform_0, window_bounds = array<i64: 8, 10>}, {pipeline_mode = #tpu.pipeline_mode<synchronous>, transform_indices = @transform_1, window_bounds = array<i64: 10, 128>}, {pipeline_mode = #tpu.pipeline_mode<synchronous>, transform_indices = @transform_2, window_bounds = array<i64: 1, 128>}, {pipeline_mode = #tpu.pipeline_mode<synchronous>, transform_indices = @transform_3, window_bounds = array<i64: 128, 128>}, {pipeline_mode = #tpu.pipeline_mode<synchronous>, transform_indices = @transform_4, window_bounds = array<i64: 1, 128>}, {transform_indices = @transform_5, window_bounds = array<i64: 8, 128>}]} {
    %c0 = arith.constant 0 : index
    %c0_0 = arith.constant 0 : index
    %0 = vector.load %arg1[%c0, %c0_0] : memref<8x10xf32, #tpu.memory_space<vmem>>, vector<8x10xf32>
    %1 = arith.truncf %0 : vector<8x10xf32> to vector<8x10xbf16>
    %c0_1 = arith.constant 0 : index
    %c0_2 = arith.constant 0 : index
    %2 = vector.load %arg2[%c0_1, %c0_2] : memref<10x128xbf16, #tpu.memory_space<vmem>>, vector<10x128xbf16>
    %cst = arith.constant dense<0.000000e+00> : vector<8x128xf32>
    %3 = tpu.matmul %1, %2, %cst {dimension_numbers = #tpu.dot_dimension_numbers<[1], [0], [0], [1], [0, 0, 1, 1], [], []>} : vector<8x10xbf16>, vector<10x128xbf16>, vector<8x128xf32> -> vector<8x128xf32>
    %c0_3 = arith.constant 0 : index
    %c0_4 = arith.constant 0 : index
    %4 = vector.load %arg3[%c0_3, %c0_4] : memref<1x128xf32, #tpu.memory_space<vmem>>, vector<1x128xf32>
    %5 = vector.broadcast %4 : vector<1x128xf32> to vector<8x128xf32>
    %6 = arith.addf %3, %5 : vector<8x128xf32>
    %cst_5 = arith.constant 0.000000e+00 : f32
    %7 = vector.broadcast %cst_5 : f32 to vector<8x128xf32>
    %8 = arith.maximumf %6, %7 : vector<8x128xf32>
    %9 = arith.truncf %8 : vector<8x128xf32> to vector<8x128xbf16>
    %c0_6 = arith.constant 0 : index
    %c0_7 = arith.constant 0 : index
    %10 = vector.load %arg4[%c0_6, %c0_7] : memref<128x128xbf16, #tpu.memory_space<vmem>>, vector<128x128xbf16>
    %cst_8 = arith.constant dense<0.000000e+00> : vector<8x128xf32>
    %11 = tpu.matmul %9, %10, %cst_8 {dimension_numbers = #tpu.dot_dimension_numbers<[1], [0], [0], [1], [0, 0, 1, 1], [], []>} : vector<8x128xbf16>, vector<128x128xbf16>, vector<8x128xf32> -> vector<8x128xf32>
    %c0_9 = arith.constant 0 : index
    %c0_10 = arith.constant 0 : index
    %12 = vector.load %arg5[%c0_9, %c0_10] : memref<1x128xf32, #tpu.memory_space<vmem>>, vector<1x128xf32>
    %13 = vector.broadcast %12 : vector<1x128xf32> to vector<8x128xf32>
    %14 = arith.addf %11, %13 : vector<8x128xf32>
    %15 = arith.truncf %14 : vector<8x128xf32> to vector<8x128xbf16>
    %c0_11 = arith.constant 0 : index
    %c0_12 = arith.constant 0 : index
    %16 = vector.load %arg6[%c0_11, %c0_12] : memref<8x128xbf16, #tpu.memory_space<vmem>>, vector<8x128xbf16>
    tpu.vector_store %arg6[%c0_11, %c0_12], %15 {strides = array<i32>} : memref<8x128xbf16, #tpu.memory_space<vmem>>, vector<8x128xbf16>,
    return
  }
  func.func @transform_0(%arg0: i32) -> (i32, i32) {
    %c0_i32 = arith.constant 0 : i32
    %c0_i32_0 = arith.constant 0 : i32
    return %arg0, %c0_i32 : i32, i32
  }
  func.func @transform_1(%arg0: i32) -> (i32, i32) {
    %c0_i32 = arith.constant 0 : i32
    %c0_i32_0 = arith.constant 0 : i32
    %c0_i32_1 = arith.constant 0 : i32
    return %c0_i32, %c0_i32_0 : i32, i32
  }
  func.func @transform_2(%arg0: i32) -> (i32, i32) {
    %c0_i32 = arith.constant 0 : i32
    %c0_i32_0 = arith.constant 0 : i32
    %c0_i32_1 = arith.constant 0 : i32
    return %c0_i32, %c0_i32_0 : i32, i32
  }
  func.func @transform_3(%arg0: i32) -> (i32, i32) {
    %c0_i32 = arith.constant 0 : i32
    %c0_i32_0 = arith.constant 0 : i32
    %c0_i32_1 = arith.constant 0 : i32
    return %c0_i32, %c0_i32_0 : i32, i32
  }
  func.func @transform_4(%arg0: i32) -> (i32, i32) {
    %c0_i32 = arith.constant 0 : i32
    %c0_i32_0 = arith.constant 0 : i32
    %c0_i32_1 = arith.constant 0 : i32
    return %c0_i32, %c0_i32_0 : i32, i32
  }
  func.func @transform_5(%arg0: i32) -> (i32, i32) {
    %c0_i32 = arith.constant 0 : i32
    %c0_i32_0 = arith.constant 0 : i32
    return %arg0, %c0_i32 : i32, i32
  }
}

</mosaic_0001>

<llo_original>
// kernel: mlp_forward.1
$region0: #{mlp_forward.1}
  #allocation0 [shape = 'u32[]', space=smem, size = 0x4, offset = 0x4, fixed_abs, tag = 'smem constant byte address 0x4 - core index']
  #allocation1 [shape = 'u32[144,128]{1,0:T(1,128)}', space=vmem, size = 0x12000, scoped, tag = 'internal scratch']
  %s0 = inlined_call_operand.hbm [shape: f32[8,10], index: 0, kind: input, shape index: {}]
  %s1 = inlined_call_operand.hbm [shape: bf16[10,128], index: 1, kind: input, shape index: {}]
  %s2 = inlined_call_operand.vmem [shape: f32[1,128], index: 2, kind: input, shape index: {}]
  %s3 = inlined_call_operand.hbm [shape: bf16[128,128], index: 3, kind: input, shape index: {}]
  %s4 = inlined_call_operand.vmem [shape: f32[1,128], index: 4, kind: input, shape index: {}]
  %s5 = inlined_call_operand.vmem [shape: bf16[8,128], index: 5, kind: output, shape index: {}]
  %s6 = sld [smem:[#allocation0]]
  $region42: #{mlp_forward.1} parent=0
    _
  %s8 = ssub.s32 1, %s6
  %s9 = scalar_select 0, %s8, %s6
  $region1: #{mlp_forward.1} parent=0
    #allocation2 [shape = 'u8[4096]{0}', space=vmem, size = 0x1000, scoped, tag = 'input window, operand 0, single buffered']
    #allocation3 [shape = 's32[1]{0}', space=sflag, size = 0x4, scoped, tag = 'scoped memory for mlp_forward.1']
    #allocation4 [shape = 'u8[4096]{0}', space=vmem, size = 0x1000, scoped, tag = 'input window, operand 1, single buffered']
    #allocation5 [shape = 's32[1]{0}', space=sflag, size = 0x4, scoped, tag = 'scoped memory for mlp_forward.1']
    #allocation6 [shape = 'u8[32768]{0}', space=vmem, size = 0x8000, scoped, tag = 'input window, operand 3, single buffered']
    %10 = vsyncpa [#allocation3], 0
    %11 = vsyncpa [#allocation5], 0
    // Predicated region
    $region2: #{mlp_forward.1} parent=1 // pred_check
      _
    $region3: #{mlp_forward.1} parent=1 // pred_check_branch
      %13 = sbr.rel (0) target = $region5
    $region4: #{mlp_forward.1} parent=1 // pred_region
      %s15 = ssub.s32 128, 128
      %16 = vsyncadd [#allocation3], %s15
      %s18 = sshll.u32 [#allocation2], 4
      %s19 = int_to_ptr.vmem [resolvable:$true] %s18
      %21 = dma.hbm_to_vmem [thread:$0]  %s0, 128, %s19, [#allocation3]
    $region5: #{mlp_forward.1} parent=1 // pred_fallthru
      _
    // Predicated region
    $region6: #{mlp_forward.1} parent=1 // pred_check
      _
    $region7: #{mlp_forward.1} parent=1 // pred_check_branch
      %23 = sbr.rel (0) target = $region9
    $region8: #{mlp_forward.1} parent=1 // pred_region
      %s25 = ssub.s32 128, 128
      %26 = vsyncadd [#allocation5], %s25
      %s27 = sshll.u32 [#allocation4], 4
      %s28 = int_to_ptr.vmem [resolvable:$true] %s27
      %33 = dma.hbm_to_vmem [thread:$0]  %s1, 128, %s28, [#allocation5], 64, 64, 4
    $region9: #{mlp_forward.1} parent=1 // pred_fallthru
      _
    // Predicated region
    $region10: #{mlp_forward.1} parent=1 // pred_check
      _
    $region11: #{mlp_forward.1} parent=1 // pred_check_branch
      %35 = sbr.rel (0) target = $region13
    $region12: #{mlp_forward.1} parent=1 // pred_region
      _
    $region13: #{mlp_forward.1} parent=1 // pred_fallthru
      _
    // Predicated region
    $region14: #{mlp_forward.1} parent=1 // pred_check
      _
    $region15: #{mlp_forward.1} parent=1 // pred_check_branch
      %37 = sbr.rel (0) target = $region17
    $region16: #{mlp_forward.1} parent=1 // pred_region
      %s39 = ssub.s32 1024, 1024
      %40 = vsyncadd [#allocation5], %s39
      %s41 = sshll.u32 [#allocation6], 4
      %s42 = int_to_ptr.vmem [resolvable:$true] %s41
      %47 = dma.hbm_to_vmem [thread:$0]  %s3, 1024, %s42, [#allocation5], 64, 64, 4
    $region17: #{mlp_forward.1} parent=1 // pred_fallthru
      _
    // Predicated region
    $region18: #{mlp_forward.1} parent=1 // pred_check
      _
    $region19: #{mlp_forward.1} parent=1 // pred_check_branch
      %49 = sbr.rel (0) target = $region21
    $region20: #{mlp_forward.1} parent=1 // pred_region
      _
    $region21: #{mlp_forward.1} parent=1 // pred_fallthru
      _
    // Predicated region
    $region22: #{mlp_forward.1} parent=1 // pred_check
      _
    $region23: #{mlp_forward.1} parent=1 // pred_check_branch
      %51 = sbr.rel (0) target = $region25
    $region24: #{mlp_forward.1} parent=1 // pred_region
      %52 = dma.done [#allocation3], 128
    $region25: #{mlp_forward.1} parent=1 // pred_fallthru
      _
    // Predicated region
    $region26: #{mlp_forward.1} parent=1 // pred_check
      _
    $region27: #{mlp_forward.1} parent=1 // pred_check_branch
      %54 = sbr.rel (0) target = $region29
    $region28: #{mlp_forward.1} parent=1 // pred_region
      %55 = dma.done [#allocation5], 128
    $region29: #{mlp_forward.1} parent=1 // pred_fallthru
      _
    // Predicated region
    $region30: #{mlp_forward.1} parent=1 // pred_check
      _
    $region31: #{mlp_forward.1} parent=1 // pred_check_branch
      %57 = sbr.rel (0) target = $region33
    $region32: #{mlp_forward.1} parent=1 // pred_region
      %58 = dma.done [#allocation5], 1024
    $region33: #{mlp_forward.1} parent=1 // pred_fallthru
      _
    %v60 = vld [vmem:[#allocation2] sm:$0xff]
    %v61 = vpack.c.bf16 %v60, %v60
    %v62 = vld [vmem:[#allocation4] sm:$0xf]
    %v63 = vld [vmem:[#allocation4 + $0x4] sm:$0x1]
    %v64 = vld [vmem:[%s2] sm:$0x1]
    %v66 = vlaneseq
    %v67 = vshrl.u32 %v66, 7
    %v68 = vsub.s32 0, %v67
    %v69 = vrot.slane %v64, %v68
    %v73 = vunpack.c.l.b16 %v62
    %v74 = vunpack.c.l.b16 %v63
    %v75 = vpack.c.b16 %v74, %v73
    %vm76 = vcmask 80896
    %v78 = vsel %vm76, %v61, 0
    %vm80 = vcmask 1044480
    %v82 = vsel %vm80, %v75, 0
    %84 = vmatprep.subr.bf16.mxu0 0
    %85 = vmatpush1.bf16.msra.mxu0 0
    %86 = vmatprep.subr.bf16.mxu0 0
    %87 = vmatpush1.bf16.msra.mxu0 0
    %88 = vmatprep.subr.bf16.mxu0 0
    %89 = vmatpush1.bf16.msra.mxu0 0
    %90 = vmatprep.subr.bf16.mxu0 0
    %91 = vmatpush1.bf16.msra.mxu0 0
    %92 = vmatprep.subr.bf16.mxu0 0
    %93 = vmatpush1.bf16.msra.mxu0 0
    %94 = vmatprep.subr.bf16.mxu0 0
    %95 = vmatpush1.bf16.msra.mxu0 0
    %96 = vmatprep.subr.bf16.mxu0 0
    %97 = vmatpush1.bf16.msra.mxu0 0
    %98 = vmatprep.subr.bf16.mxu0 0
    %99 = vmatpush1.bf16.msra.mxu0 %v82
    %100 = vmatprep.subr.bf16.mxu0 0
    %101 = vmatpush2.bf16.msra.mxu0 0
    %102 = vmatprep.subr.bf16.mxu0 0
    %103 = vmatpush2.bf16.msra.mxu0 0
    %104 = vmatprep.subr.bf16.mxu0 0
    %105 = vmatpush2.bf16.msra.mxu0 0
    %106 = vmatprep.subr.bf16.mxu0 0
    %107 = vmatpush2.bf16.msra.mxu0 0
    %108 = vmatprep.subr.bf16.mxu0 0
    %109 = vmatpush2.bf16.msra.mxu0 0
    %110 = vmatprep.subr.bf16.mxu0 0
    %111 = vmatpush2.bf16.msra.mxu0 0
    %112 = vmatprep.subr.bf16.mxu0 0
    %113 = vmatpush2.bf16.msra.mxu0 0
    %114 = vmatprep.subr.bf16.mxu0 0
    %115 = vmatpush2.bf16.msra.mxu0 0
    %116 = vmatprep.mubr.bf16.mxu0 0
    %117 = vmatmul.mubr.bf16.gmra.mxu0 %v78
    %v118 = vpop.f32.mrf.mxu0
    %v119 = vadd.f32 %v69, %v118
    %v120 = vpop.f32.mrf.mxu0
    %v121 = vpop.f32.mrf.mxu0
    %v122 = vpop.f32.mrf.mxu0
    %123 = vdwg.mxu0
    %v124 = vmax.f32 %v119, 0.0
    %v125 = vpack.c.bf16 %v124, %v124
    %v126 = vld [vmem:[#allocation6] sm:$0xf]
    %v127 = vld [vmem:[#allocation6 + $0x4] sm:$0xf]
    %v128 = vld [vmem:[#allocation6 + $0x8] sm:$0xf]
    %v129 = vld [vmem:[#allocation6 + $0xc] sm:$0xf]
    %v130 = vld [vmem:[#allocation6 + $0x10] sm:$0xf]
    %v131 = vld [vmem:[#allocation6 + $0x14] sm:$0xf]
    %v132 = vld [vmem:[#allocation6 + $0x18] sm:$0xf]
    %v133 = vld [vmem:[#allocation6 + $0x1c] sm:$0xf]
    %v134 = vld [vmem:[#allocation6 + $0x20] sm:$0xf]
    %v135 = vld [vmem:[#allocation6 + $0x24] sm:$0xf]
    %v136 = vld [vmem:[#allocation6 + $0x28] sm:$0xf]
    %v137 = vld [vmem:[#allocation6 + $0x2c] sm:$0xf]
    %v138 = vld [vmem:[#allocation6 + $0x30] sm:$0xf]
    %v139 = vld [vmem:[#allocation6 + $0x34] sm:$0xf]
    %v140 = vld [vmem:[#allocation6 + $0x38] sm:$0xf]
    %v141 = vld [vmem:[#allocation6 + $0x3c] sm:$0xf]
    %v142 = vld [vmem:[%s4] sm:$0x1]
    %v144 = vlaneseq
    %v145 = vshrl.u32 %v144, 7
    %v146 = vsub.s32 0, %v145
    %v147 = vrot.slane %v142, %v146
    %v165 = vunpack.c.l.b16 %v126
    %v166 = vunpack.c.l.b16 %v127
    %v167 = vunpack.c.l.b16 %v128
    %v168 = vunpack.c.l.b16 %v129
    %v169 = vunpack.c.l.b16 %v130
    %v170 = vunpack.c.l.b16 %v131
    %v171 = vunpack.c.l.b16 %v132
    %v172 = vunpack.c.l.b16 %v133
    %v173 = vunpack.c.l.b16 %v134
    %v174 = vunpack.c.l.b16 %v135
    %v175 = vunpack.c.l.b16 %v136
    %v176 = vunpack.c.l.b16 %v137
    %v177 = vunpack.c.l.b16 %v138
    %v178 = vunpack.c.l.b16 %v139
    %v179 = vunpack.c.l.b16 %v140
    %v180 = vunpack.c.l.b16 %v141
    %v181 = vpack.c.b16 %v166, %v165
    %v182 = vpack.c.b16 %v168, %v167
    %v183 = vpack.c.b16 %v170, %v169
    %v184 = vpack.c.b16 %v172, %v171
    %v185 = vpack.c.b16 %v174, %v173
    %v186 = vpack.c.b16 %v176, %v175
    %v187 = vpack.c.b16 %v178, %v177
    %v188 = vpack.c.b16 %v180, %v179
    %197 = vmatprep.subr.bf16.mxu0 0
    %198 = vmatpush1.bf16.msra.mxu0 %v188
    %199 = vmatprep.subr.bf16.mxu0 0
    %200 = vmatpush1.bf16.msra.mxu0 %v187
    %201 = vmatprep.subr.bf16.mxu0 0
    %202 = vmatpush1.bf16.msra.mxu0 %v186
    %203 = vmatprep.subr.bf16.mxu0 0
    %204 = vmatpush1.bf16.msra.mxu0 %v185
    %205 = vmatprep.subr.bf16.mxu0 0
    %206 = vmatpush1.bf16.msra.mxu0 %v184
    %207 = vmatprep.subr.bf16.mxu0 0
    %208 = vmatpush1.bf16.msra.mxu0 %v183
    %209 = vmatprep.subr.bf16.mxu0 0
    %210 = vmatpush1.bf16.msra.mxu0 %v182
    %211 = vmatprep.subr.bf16.mxu0 0
    %212 = vmatpush1.bf16.msra.mxu0 %v181
    %213 = vmatprep.subr.bf16.mxu0 0
    %214 = vmatpush2.bf16.msra.mxu0 0
    %215 = vmatprep.subr.bf16.mxu0 0
    %216 = vmatpush2.bf16.msra.mxu0 0
    %217 = vmatprep.subr.bf16.mxu0 0
    %218 = vmatpush2.bf16.msra.mxu0 0
    %219 = vmatprep.subr.bf16.mxu0 0
    %220 = vmatpush2.bf16.msra.mxu0 0
    %221 = vmatprep.subr.bf16.mxu0 0
    %222 = vmatpush2.bf16.msra.mxu0 0
    %223 = vmatprep.subr.bf16.mxu0 0
    %224 = vmatpush2.bf16.msra.mxu0 0
    %225 = vmatprep.subr.bf16.mxu0 0
    %226 = vmatpush2.bf16.msra.mxu0 0
    %227 = vmatprep.subr.bf16.mxu0 0
    %228 = vmatpush2.bf16.msra.mxu0 0
    %229 = vmatprep.mubr.bf16.mxu0 0
    %230 = vmatmul.mubr.bf16.gmra.mxu0 %v125
    %v231 = vpop.f32.mrf.mxu0
    %v232 = vadd.f32 %v147, %v231
    %v233 = vpop.f32.mrf.mxu0
    %v234 = vpop.f32.mrf.mxu0
    %v235 = vpop.f32.mrf.mxu0
    %236 = vdwg.mxu0
    %v237 = vpack.c.bf16 %v232, %v232
    %238 = vst [vmem:[%s5] sm:$0xf] %v237
    // Predicated region
    $region34: #{mlp_forward.1} parent=1 // pred_check
      _
    $region35: #{mlp_forward.1} parent=1 // pred_check_branch
      %240 = sbr.rel (0) target = $region37
    $region36: #{mlp_forward.1} parent=1 // pred_region
      _
    $region37: #{mlp_forward.1} parent=1 // pred_fallthru
      _
    // Predicated region
    $region38: #{mlp_forward.1} parent=1 // pred_check
      _
    $region39: #{mlp_forward.1} parent=1 // pred_check_branch
      %242 = sbr.rel (0) target = $region41
    $region40: #{mlp_forward.1} parent=1 // pred_region
      _
    $region41: #{mlp_forward.1} parent=1 // pred_fallthru
      _
    %243 = vsyncpa [#allocation3], 1
    %244 = vsyncpa [#allocation5], 1

</llo_original>
